<compile_context>
chip_gen: v7x
topology: tpu7x:2x2x1
jax: 0.10.0
libtpu: 0.0.40
codegen_flags: <defaults>
</compile_context>

<pallas_src>
import jax
import jax.numpy as jnp
from jax.experimental import pallas as pl
from jax.experimental.pallas import tpu as pltpu


def _predict_kernel(x_ref, w_ref, b_ref, o_ref):
    # x_ref: (TILE_M, dim)  w_ref: (dim, P)  b_ref: (1, P)  o_ref: (TILE_M, P)
    # Linear layer on the MXU with f32 accumulation, bias broadcast over rows.
    logits = jnp.dot(x_ref[...], w_ref[...], preferred_element_type=jnp.float32)
    logits = logits + b_ref[...]  # padded lanes carry -1e30 -> exp() == 0

    # Numerically-stable softmax along the lane axis (matches nn.Softmax(dim=-1)).
    m = jnp.max(logits, axis=-1, keepdims=True)
    e = jnp.exp(logits - m)
    denom = jnp.sum(e, axis=-1, keepdims=True)
    probs = e * pl.reciprocal(denom, approx=False)

    o_ref[...] = probs.astype(o_ref.dtype)


def discrete_action_predict(token, weight, bias, *, max_tile_m=1024):
    """token: (..., dim); weight: (209, dim) [PyTorch nn.Linear layout]; bias: (209,)."""
    dim = token.shape[-1]
    out_dim = weight.shape[0]          # 11 * 19 = 209
    lead_shape = token.shape[:-1]

    x2d = token.reshape(-1, dim)       # (N, dim)
    n_rows = x2d.shape[0]

    # Pad the output feature axis to a multiple of 128 lanes (209 -> 256).
    padded = ((out_dim + 127) // 128) * 128
    pad = padded - out_dim

    w_t = jnp.pad(weight.T.astype(token.dtype), ((0, 0), (0, pad)))      # (dim, 256)
    b_pad = jnp.concatenate(
        [bias.astype(jnp.float32),
         jnp.full((pad,), -1e30, dtype=jnp.float32)]
    ).reshape(1, padded)                                                  # (1, 256)

    # Row tile: large (amortize ~0.35us/step), multiple of 8, clamped to problem.
    tile_m = min(max_tile_m, max(8, ((n_rows + 7) // 8) * 8))
    grid = (pl.cdiv(n_rows, tile_m),)

    itemsize = jnp.dtype(token.dtype).itemsize
    cost = pl.CostEstimate(
        flops=2 * n_rows * dim * padded,
        transcendentals=n_rows * padded,
        bytes_accessed=(n_rows * dim * itemsize          # input
                        + dim * padded * itemsize        # resident weights
                        + padded * 4                     # bias
                        + n_rows * padded * 4),          # output
    )

    out2d = pl.pallas_call(
        _predict_kernel,
        out_shape=jax.ShapeDtypeStruct((n_rows, padded), jnp.float32),
        grid=grid,
        in_specs=[
            pl.BlockSpec((tile_m, dim), lambda i: (i, 0)),   # x rows: streamed
            pl.BlockSpec((dim, padded), lambda i: (0, 0)),   # W^T: resident
            pl.BlockSpec((1, padded), lambda i: (0, 0)),     # bias: resident
        ],
        out_specs=pl.BlockSpec((tile_m, padded), lambda i: (i, 0)),
        compiler_params=pltpu.CompilerParams(
            dimension_semantics=("parallel",)),
        cost_estimate=cost,
    )(x2d, w_t, b_pad)

    # Drop the padded lanes and restore leading dims.
    return out2d[:, :out_dim].reshape(*lead_shape, out_dim)


if __name__ == "__main__":
    # Small shapes consistent with the module: batch=2, seq=8, hidden dim=32.
    batch, seq, dim = 2, 8, 32
    out_dim = 11 * 19  # 209

    key = jax.random.PRNGKey(0)
    k_tok, k_w, k_b = jax.random.split(key, 3)

    token = jax.random.normal(k_tok, (batch, seq, dim), dtype=jnp.float32)
    # Deterministic synthetic parameters (PyTorch nn.Linear layout: (out, in)).
    weight = jax.random.normal(k_w, (out_dim, dim), dtype=jnp.float32) * 0.05
    bias = jax.random.normal(k_b, (out_dim,), dtype=jnp.float32) * 0.01

    out = discrete_action_predict(token, weight, bias)
    out = jax.block_until_ready(out)

    # Reference check in plain JAX (same math as the PyTorch forward).
    ref = jax.nn.softmax(token @ weight.T + bias, axis=-1)
    assert out.shape == (batch, seq, out_dim)
    assert jnp.allclose(out, ref, atol=1e-5, rtol=1e-5)
    # Softmax rows should sum to 1.
    assert jnp.allclose(jnp.sum(out, axis=-1), 1.0, atol=1e-5)

    print("KERNEL_OK")
</pallas_src>

<mosaic_0001>
module attributes {stable_mosaic.version = 11 : i64} {
  func.func @_predict_kernel(%arg0: i32, %arg1: memref<16x32xf32, #tpu.memory_space<vmem>>, %arg2: memref<32x256xf32, #tpu.memory_space<vmem>>, %arg3: memref<1x256xf32, #tpu.memory_space<vmem>>, %arg4: memref<16x256xf32, #tpu.memory_space<vmem>>) attributes {dimension_semantics = [#tpu.dimension_semantics<parallel>], iteration_bounds = array<i64: 1>, scalar_prefetch = 0 : i64, scratch_operands = 0 : i64, tpu.core_type = #tpu.core_type<tc>, window_params = [{transform_indices = @transform_0, window_bounds = array<i64: 16, 32>}, {pipeline_mode = #tpu.pipeline_mode<synchronous>, transform_indices = @transform_1, window_bounds = array<i64: 32, 256>}, {pipeline_mode = #tpu.pipeline_mode<synchronous>, transform_indices = @transform_2, window_bounds = array<i64: 1, 256>}, {transform_indices = @transform_3, window_bounds = array<i64: 16, 256>}]} {
    %c0 = arith.constant 0 : index
    %c0_0 = arith.constant 0 : index
    %0 = vector.load %arg1[%c0, %c0_0] : memref<16x32xf32, #tpu.memory_space<vmem>>, vector<16x32xf32>
    %c0_1 = arith.constant 0 : index
    %c0_2 = arith.constant 0 : index
    %1 = vector.load %arg2[%c0_1, %c0_2] : memref<32x256xf32, #tpu.memory_space<vmem>>, vector<32x256xf32>
    %cst = arith.constant dense<0.000000e+00> : vector<16x256xf32>
    %2 = tpu.matmul %0, %1, %cst {dimension_numbers = #tpu.dot_dimension_numbers<[1], [0], [0], [1], [0, 0, 1, 1], [], []>} : vector<16x32xf32>, vector<32x256xf32>, vector<16x256xf32> -> vector<16x256xf32>
    %c0_3 = arith.constant 0 : index
    %c0_4 = arith.constant 0 : index
    %3 = vector.load %arg3[%c0_3, %c0_4] : memref<1x256xf32, #tpu.memory_space<vmem>>, vector<1x256xf32>
    %4 = vector.broadcast %3 : vector<1x256xf32> to vector<16x256xf32>
    %5 = arith.addf %2, %4 : vector<16x256xf32>
    %cst_5 = arith.constant dense<0xFF800000> : vector<16xf32>
    %6 = vector.multi_reduction <maximumf>, %5, %cst_5 [1] : vector<16x256xf32> to vector<16xf32>
    %7 = vector.shape_cast %6 : vector<16xf32> to vector<16x1xf32>
    %8 = vector.broadcast %7 : vector<16x1xf32> to vector<16x256xf32>
    %9 = arith.subf %5, %8 : vector<16x256xf32>
    %10 = math.exp %9 : vector<16x256xf32>
    %cst_6 = arith.constant dense<0.000000e+00> : vector<16xf32>
    %11 = vector.multi_reduction <add>, %10, %cst_6 [1] : vector<16x256xf32> to vector<16xf32>
    %12 = vector.shape_cast %11 : vector<16xf32> to vector<16x1xf32>
    %13 = tpu.reciprocal %12 : vector<16x1xf32> -> vector<16x1xf32>
    %14 = vector.broadcast %13 : vector<16x1xf32> to vector<16x256xf32>
    %15 = arith.mulf %10, %14 : vector<16x256xf32>
    %c0_7 = arith.constant 0 : index
    %c0_8 = arith.constant 0 : index
    %16 = vector.load %arg4[%c0_7, %c0_8] : memref<16x256xf32, #tpu.memory_space<vmem>>, vector<16x256xf32>
    tpu.vector_store %arg4[%c0_7, %c0_8], %15 {strides = array<i32>} : memref<16x256xf32, #tpu.memory_space<vmem>>, vector<16x256xf32>,
    return
  }
  func.func @transform_0(%arg0: i32) -> (i32, i32) {
    %c0_i32 = arith.constant 0 : i32
    %c0_i32_0 = arith.constant 0 : i32
    return %arg0, %c0_i32 : i32, i32
  }
  func.func @transform_1(%arg0: i32) -> (i32, i32) {
    %c0_i32 = arith.constant 0 : i32
    %c0_i32_0 = arith.constant 0 : i32
    %c0_i32_1 = arith.constant 0 : i32
    return %c0_i32, %c0_i32_0 : i32, i32
  }
  func.func @transform_2(%arg0: i32) -> (i32, i32) {
    %c0_i32 = arith.constant 0 : i32
    %c0_i32_0 = arith.constant 0 : i32
    %c0_i32_1 = arith.constant 0 : i32
    return %c0_i32, %c0_i32_0 : i32, i32
  }
  func.func @transform_3(%arg0: i32) -> (i32, i32) {
    %c0_i32 = arith.constant 0 : i32
    %c0_i32_0 = arith.constant 0 : i32
    return %arg0, %c0_i32 : i32, i32
  }
}

</mosaic_0001>

<llo_original>
// kernel: tpu_custom_call.1
$region0: #{tpu_custom_call.1}
  #allocation0 [shape = 'u32[]', space=smem, size = 0x4, offset = 0x4, fixed_abs, tag = 'smem constant byte address 0x4 - core index']
  #allocation1 [shape = 'u32[144,128]{1,0:T(1,128)}', space=vmem, size = 0x12000, scoped, tag = 'internal scratch']
  %s0 = inlined_call_operand.hbm [shape: f32[16,32], index: 0, kind: input, shape index: {}]
  %s1 = inlined_call_operand.hbm [shape: f32[32,256], index: 1, kind: input, shape index: {}]
  %s2 = inlined_call_operand.vmem [shape: f32[1,256], index: 2, kind: input, shape index: {}]
  %s3 = inlined_call_operand.hbm [shape: f32[16,256], index: 3, kind: output, shape index: {}]
  %s4 = sld [smem:[#allocation0]]
  $region30: #{tpu_custom_call.1} parent=0
    _
  %s6 = ssub.s32 1, %s4
  %s7 = scalar_select 0, %s6, %s4
  $region1: #{tpu_custom_call.1} parent=0
    #allocation2 [shape = 'u8[8192]{0}', space=vmem, size = 0x2000, scoped, tag = 'input window, operand 0, single buffered']
    #allocation3 [shape = 's32[1]{0}', space=sflag, size = 0x4, scoped, tag = 'scoped memory for tpu_custom_call.1']
    #allocation4 [shape = 's32[1]{0}', space=sflag, size = 0x4, scoped, tag = 'scoped memory for tpu_custom_call.1']
    #allocation5 [shape = 'u8[32768]{0}', space=vmem, size = 0x8000, scoped, tag = 'input window, operand 1, single buffered']
    #allocation6 [shape = 's32[1]{0}', space=sflag, size = 0x4, scoped, tag = 'scoped memory for tpu_custom_call.1']
    #allocation7 [shape = 'u8[16384]{0}', space=vmem, size = 0x4000, scoped, tag = 'output window, operand 0, single buffered']
    %8 = vsyncpa [#allocation3], 0
    %9 = vsyncpa [#allocation6], 0
    %10 = vsyncpa [#allocation4], 0
    // Predicated region
    $region2: #{tpu_custom_call.1} parent=1 // pred_check
      _
    $region3: #{tpu_custom_call.1} parent=1 // pred_check_branch
      %12 = sbr.rel (0) target = $region5
    $region4: #{tpu_custom_call.1} parent=1 // pred_region
      %s14 = ssub.s32 256, 256
      %15 = vsyncadd [#allocation3], %s14
      %s16 = sshll.u32 [#allocation2], 4
      %s17 = int_to_ptr.vmem [resolvable:$true] %s16
      %22 = dma.hbm_to_vmem [thread:$0]  %s0, 256, %s17, [#allocation3], 128, 128, 8
    $region5: #{tpu_custom_call.1} parent=1 // pred_fallthru
      _
    // Predicated region
    $region6: #{tpu_custom_call.1} parent=1 // pred_check
      _
    $region7: #{tpu_custom_call.1} parent=1 // pred_check_branch
      %24 = sbr.rel (0) target = $region9
    $region8: #{tpu_custom_call.1} parent=1 // pred_region
      %s26 = ssub.s32 1024, 1024
      %27 = vsyncadd [#allocation6], %s26
      %s28 = sshll.u32 [#allocation5], 4
      %s29 = int_to_ptr.vmem [resolvable:$true] %s28
      %34 = dma.hbm_to_vmem [thread:$0]  %s1, 1024, %s29, [#allocation6], 256, 256, 16
    $region9: #{tpu_custom_call.1} parent=1 // pred_fallthru
      _
    // Predicated region
    $region10: #{tpu_custom_call.1} parent=1 // pred_check
      _
    $region11: #{tpu_custom_call.1} parent=1 // pred_check_branch
      %36 = sbr.rel (0) target = $region13
    $region12: #{tpu_custom_call.1} parent=1 // pred_region
      _
    $region13: #{tpu_custom_call.1} parent=1 // pred_fallthru
      _
    // Predicated region
    $region14: #{tpu_custom_call.1} parent=1 // pred_check
      _
    $region15: #{tpu_custom_call.1} parent=1 // pred_check_branch
      %38 = sbr.rel (0) target = $region17
    $region16: #{tpu_custom_call.1} parent=1 // pred_region
      %39 = dma.done [#allocation3], 256
    $region17: #{tpu_custom_call.1} parent=1 // pred_fallthru
      _
    // Predicated region
    $region18: #{tpu_custom_call.1} parent=1 // pred_check
      _
    $region19: #{tpu_custom_call.1} parent=1 // pred_check_branch
      %41 = sbr.rel (0) target = $region21
    $region20: #{tpu_custom_call.1} parent=1 // pred_region
      %42 = dma.done [#allocation6], 1024
    $region21: #{tpu_custom_call.1} parent=1 // pred_fallthru
      _
    %v43 = vld [vmem:[#allocation2] sm:$0xff]
    %v44 = vld [vmem:[#allocation2 + $0x8] sm:$0xff]
    %v45 = vld [vmem:[#allocation5] sm:$0xff]
    %v46 = vld [vmem:[#allocation5 + $0x8] sm:$0xff]
    %v47 = vld [vmem:[#allocation5 + $0x10] sm:$0xff]
    %v48 = vld [vmem:[#allocation5 + $0x18] sm:$0xff]
    %v49 = vld [vmem:[#allocation5 + $0x20] sm:$0xff]
    %v50 = vld [vmem:[#allocation5 + $0x28] sm:$0xff]
    %v51 = vld [vmem:[#allocation5 + $0x30] sm:$0xff]
    %v52 = vld [vmem:[#allocation5 + $0x38] sm:$0xff]
    %v53 = vld [vmem:[%s2] sm:$0x3]
    %v55 = vlaneseq
    %v56 = vshrl.u32 %v55, 7
    %v57 = vsub.s32 0, %v56
    %v58 = vrot.slane %v53, %v57
    %v59 = vlaneseq
    %v60 = vshrl.u32 %v59, 7
    %v61 = vsub.s32 1, %v60
    %v62 = vrot.slane %v53, %v61
    %vm65 = vcmask 261120
    %v67 = vsel %vm65, %v43, 0
    %v70 = vsel %vm65, %v44, 0
    %72 = vmatprep.subr.mxu0 %v46
    %73 = vmatpush1.msra.mxu0 %v45
    %74 = vmatprep.subr.mxu0 %v48
    %75 = vmatpush1.msra.mxu0 %v47
    %76 = vmatprep.subr.mxu0 %v50
    %77 = vmatpush1.msra.mxu0 %v49
    %78 = vmatprep.subr.mxu0 %v52
    %79 = vmatpush1.msra.mxu0 %v51
    %80 = vmatprep.subr.mxu0 0.0
    %81 = vmatpush1.msra.mxu0 0.0
    %82 = vmatprep.subr.mxu0 0.0
    %83 = vmatpush1.msra.mxu0 0.0
    %84 = vmatprep.subr.mxu0 0.0
    %85 = vmatpush1.msra.mxu0 0.0
    %86 = vmatprep.subr.mxu0 0.0
    %87 = vmatpush1.msra.mxu0 0.0
    %88 = vmatprep.subr.mxu0 0.0
    %89 = vmatpush1.msra.mxu0 0.0
    %90 = vmatprep.subr.mxu0 0.0
    %91 = vmatpush1.msra.mxu0 0.0
    %92 = vmatprep.subr.mxu0 0.0
    %93 = vmatpush1.msra.mxu0 0.0
    %94 = vmatprep.subr.mxu0 0.0
    %95 = vmatpush1.msra.mxu0 0.0
    %96 = vmatprep.subr.mxu0 0.0
    %97 = vmatpush1.msra.mxu0 0.0
    %98 = vmatprep.subr.mxu0 0.0
    %99 = vmatpush1.msra.mxu0 0.0
    %100 = vmatprep.subr.mxu0 0.0
    %101 = vmatpush1.msra.mxu0 0.0
    %102 = vmatprep.subr.mxu0 0.0
    %103 = vmatpush1.msra.mxu0 0.0
    %104 = vmatprep.subr.mxu0 0.0
    %105 = vmatpush1.msra.mxu0 0.0
    %106 = vmatprep.subr.mxu0 0.0
    %107 = vmatpush1.msra.mxu0 0.0
    %108 = vmatprep.subr.mxu0 0.0
    %109 = vmatpush1.msra.mxu0 0.0
    %110 = vmatprep.subr.mxu0 0.0
    %111 = vmatpush1.msra.mxu0 0.0
    %112 = vmatprep.subr.mxu0 0.0
    %113 = vmatpush1.msra.mxu0 0.0
    %114 = vmatprep.subr.mxu0 0.0
    %115 = vmatpush1.msra.mxu0 0.0
    %116 = vmatprep.subr.mxu0 0.0
    %117 = vmatpush1.msra.mxu0 0.0
    %118 = vmatprep.subr.mxu0 0.0
    %119 = vmatpush1.msra.mxu0 0.0
    %120 = vmatprep.subr.mxu0 0.0
    %121 = vmatpush1.msra.mxu0 0.0
    %122 = vmatprep.subr.mxu0 0.0
    %123 = vmatpush1.msra.mxu0 0.0
    %124 = vmatprep.subr.mxu0 0.0
    %125 = vmatpush1.msra.mxu0 0.0
    %126 = vmatprep.subr.mxu0 0.0
    %127 = vmatpush1.msra.mxu0 0.0
    %128 = vmatprep.subr.mxu0 0.0
    %129 = vmatpush1.msra.mxu0 0.0
    %130 = vmatprep.subr.mxu0 0.0
    %131 = vmatpush1.msra.mxu0 0.0
    %132 = vmatprep.subr.mxu0 0.0
    %133 = vmatpush1.msra.mxu0 0.0
    %134 = vmatprep.subr.mxu0 0.0
    %135 = vmatpush1.msra.mxu0 0.0
    %136 = vmatprep.mubr.f32.mxu0 0.0
    %137 = vmatmul.mubr.f32.gmra.mrb[0].mxu0 %v67
    %v138 = vpop.f32.mrb[0].mxu0
    %v139 = vadd.f32 %v58, %v138
    %v140 = vpop.f32.mrb[0].mxu0
    %v141 = vadd.f32 %v62, %v140
    %142 = vmatprep.mubr.f32.mxu0 0.0
    %143 = vmatmul.mubr.f32.gmra.mrb[0].mxu0 %v70
    %v144 = vpop.f32.mrb[0].mxu0
    %v145 = vadd.f32 %v58, %v144
    %v146 = vpop.f32.mrb[0].mxu0
    %v147 = vadd.f32 %v62, %v146
    %148 = vdwg.mxu0
    %v149 = vmax.f32 %v139, %v141
    %150 = vmax.xlane.f32.xlu0 %v149
    %v151 = vpop.xlane.xlu0 %150
    %v152 = vmax.f32 %v145, %v147
    %153 = vmax.xlane.f32.xlu0 %v152
    %v154 = vpop.xlane.xlu0 %153
    %v155 = vsub.f32 %v139, %v151
    %v156 = vsub.f32 %v141, %v151
    %v157 = vsub.f32 %v145, %v154
    %v158 = vsub.f32 %v147, %v154
    %v159 = vmul.f32 %v155, 1.442695
    %v160 = vpow.pop %v159
    %v161 = vmul.f32 %v156, 1.442695
    %v162 = vpow.pop %v161
    %v163 = vmul.f32 %v157, 1.442695
    %v164 = vpow.pop %v163
    %v165 = vmul.f32 %v158, 1.442695
    %v166 = vpow.pop %v165
    %v167 = vadd.f32 %v160, %v162
    %168 = vadd.xlane.f32.xlu0 %v167
    %v169 = vpop.xlane.xlu0 %168
    %v170 = vadd.f32 %v164, %v166
    %171 = vadd.xlane.f32.xlu0 %v170
    %v172 = vpop.xlane.xlu0 %171
    %v173 = vrcp.pop %v169
    %v174 = vrcp.pop %v172
    %v175 = vmul.f32 %v160, %v173
    %v176 = vmul.f32 %v162, %v173
    %v177 = vmul.f32 %v164, %v174
    %v178 = vmul.f32 %v166, %v174
    %179 = vst [vmem:[#allocation7] sm:$0xff] %v175
    %180 = vst [vmem:[#allocation7 + $0x8] sm:$0xff] %v176
    %181 = vst [vmem:[#allocation7 + $0x10] sm:$0xff] %v177
    %182 = vst [vmem:[#allocation7 + $0x18] sm:$0xff] %v178
    // Predicated region
    $region22: #{tpu_custom_call.1} parent=1 // pred_check
      _
    $region23: #{tpu_custom_call.1} parent=1 // pred_check_branch
      %184 = sbr.rel (0) target = $region25
    $region24: #{tpu_custom_call.1} parent=1 // pred_region
      %s186 = ssub.s32 512, 512
      %187 = vsyncadd [#allocation4], %s186
      %s188 = sshll.u32 [#allocation7], 4
      %s189 = int_to_ptr.vmem [resolvable:$true] %s188
      %194 = dma.vmem_to_hbm [thread:$0]  %s189, 512, %s3, [#allocation4], 256, 256, 16
    $region25: #{tpu_custom_call.1} parent=1 // pred_fallthru
      _
    // Predicated region
    $region26: #{tpu_custom_call.1} parent=1 // pred_check
      _
    $region27: #{tpu_custom_call.1} parent=1 // pred_check_branch
      %196 = sbr.rel (0) target = $region29
    $region28: #{tpu_custom_call.1} parent=1 // pred_region
      %197 = dma.done [#allocation4], 512
    $region29: #{tpu_custom_call.1} parent=1 // pred_fallthru
      _
    %198 = vsyncpa [#allocation3], 1
    %199 = vsyncpa [#allocation6], 1
    %200 = vsyncpa [#allocation4], 1

</llo_original>
